<compile_context>
chip_gen: v6e
topology: v6e:2x2x1
jax: 0.10.0
libtpu: 0.0.40
codegen_flags: <defaults>
</compile_context>

<pallas_src>
import jax
import jax.numpy as jnp
from jax import lax
from jax.experimental import pallas as pl
from jax.experimental.pallas import tpu as pltpu  # noqa: F401

# Small, module-consistent shapes.
B, S, H = 2, 8, 32          # batch, seq, hidden
NH = 2                      # attention heads
HD = H // NH                # head dim
FF = 4 * H                  # MLP hidden (=128, lane-dense)
VOCAB = 64
T = B * S                   # flattened tokens

# Rows of the packed [16, 128] bias/gain slab.
ROW_LN1G, ROW_LN1B = 0, 1
ROW_LN2G, ROW_LN2B = 2, 3
ROW_LNFG, ROW_LNFB = 4, 5
ROW_BO, ROW_B2 = 6, 7
ROW_BQKV = 8                # lanes 0:3H   (Q part already scaled by 1/sqrt(HD))
ROW_B1 = 9                  # lanes 0:FF
SLAB_ROWS = 16


def _layernorm(x, g, b, eps=1e-5):
    mu = jnp.mean(x, axis=-1, keepdims=True)
    var = jnp.mean((x - mu) ** 2, axis=-1, keepdims=True)
    return (x - mu) * lax.rsqrt(var + eps) * g + b


def gpt_pool_kernel(x_ref, bias_ref, poolw_ref, slab_ref,
                    wqkv_ref, wo_ref, w1_ref, w2_ref, out_ref):
    xf = x_ref[...]                     # [T, H] f32 embedded tokens (+ positions)
    bias = bias_ref[...]                # [T, T] f32 block-diag causal/pad/cross-batch bias
    poolw = poolw_ref[...]              # [B, T] f32 pooling weights (selector*mask*pos)
    slab = slab_ref[...]                # [16, 128] f32 packed gains / biases

    ln1g = slab[ROW_LN1G:ROW_LN1G + 1, :H]
    ln1b = slab[ROW_LN1B:ROW_LN1B + 1, :H]
    ln2g = slab[ROW_LN2G:ROW_LN2G + 1, :H]
    ln2b = slab[ROW_LN2B:ROW_LN2B + 1, :H]
    lnfg = slab[ROW_LNFG:ROW_LNFG + 1, :H]
    lnfb = slab[ROW_LNFB:ROW_LNFB + 1, :H]
    bo   = slab[ROW_BO:ROW_BO + 1, :H]
    b2   = slab[ROW_B2:ROW_B2 + 1, :H]
    bqkv = slab[ROW_BQKV:ROW_BQKV + 1, :3 * H]
    b1   = slab[ROW_B1:ROW_B1 + 1, :FF]

    # ---- transformer block: causal multi-head self-attention ----
    h = _layernorm(xf, ln1g, ln1b)
    hb = h.astype(jnp.bfloat16)
    qkv = jnp.dot(hb, wqkv_ref[...], preferred_element_type=jnp.float32) + bqkv  # [T, 3H]
    q = qkv[:, 0:H]                     # already scaled by 1/sqrt(HD) (folded at pack time)
    k = qkv[:, H:2 * H]
    v = qkv[:, 2 * H:3 * H]
    qb = q.astype(jnp.bfloat16)

    # Per-head lane masks are compile-time constants (head n owns lanes n*HD:(n+1)*HD).
    lane = lax.broadcasted_iota(jnp.int32, (1, H), 1)
    attn = None
    for n in range(NH):                 # static unroll; plain 2-D dots, no relayouts
        hm = ((lane >= n * HD) & (lane < (n + 1) * HD)).astype(jnp.float32)
        kh = (k * hm).astype(jnp.bfloat16)          # [T, H]
        vh = (v * hm).astype(jnp.bfloat16)          # [T, H]
        s = jnp.dot(qb, kh.T, preferred_element_type=jnp.float32) + bias         # [T, T]
        s = s - jnp.max(s, axis=-1, keepdims=True)
        p = jnp.exp(s)
        p = p * pl.reciprocal(jnp.sum(p, axis=-1, keepdims=True), approx=True)
        ah = jnp.dot(p.astype(jnp.bfloat16), vh, preferred_element_type=jnp.float32)  # [T, H]
        attn = ah if attn is None else attn + ah    # heads own disjoint lanes of vh

    proj = jnp.dot(attn.astype(jnp.bfloat16), wo_ref[...],
                   preferred_element_type=jnp.float32) + bo
    xf = xf + proj

    # ---- transformer block: MLP ----
    h2 = _layernorm(xf, ln2g, ln2b)
    ff = jnp.dot(h2.astype(jnp.bfloat16), w1_ref[...],
                 preferred_element_type=jnp.float32) + b1
    # TODO(synk): uses GPT-2's gelu_new; switch to exact-erf GELU if the injected backbone does.
    ff = jax.nn.gelu(ff, approximate=True)
    ff = jnp.dot(ff.astype(jnp.bfloat16), w2_ref[...],
                 preferred_element_type=jnp.float32) + b2
    xf = xf + ff

    # ---- final layernorm -> last_hidden_state ----
    lhs = _layernorm(xf, lnfg, lnfb)                 # [T, H] f32

    # ---- GPT.forward body: position-weighted masked mean pooling (one small matmul) ----
    sum_emb = jnp.dot(poolw, lhs, preferred_element_type=jnp.float32)   # [B, H]
    denom = jnp.maximum(jnp.sum(poolw, axis=-1, keepdims=True), 1e-9)   # [B, 1], clamped
    out_ref[...] = sum_emb / denom                   # exact division (tiny, accuracy matters)


def init_params(key):
    ks = jax.random.split(key, 6)
    scale = jnp.float32(0.02)
    return {
        "wte": scale * jax.random.normal(ks[0], (VOCAB, H), jnp.float32),
        "wpe": scale * jax.random.normal(ks[1], (S, H), jnp.float32),
        "ln1g": jnp.ones((1, H), jnp.float32), "ln1b": jnp.zeros((1, H), jnp.float32),
        "wqkv": scale * jax.random.normal(ks[2], (H, 3 * H), jnp.float32),
        "bqkv": jnp.zeros((1, 3 * H), jnp.float32),
        "wo": scale * jax.random.normal(ks[3], (H, H), jnp.float32),
        "bo": jnp.zeros((1, H), jnp.float32),
        "ln2g": jnp.ones((1, H), jnp.float32), "ln2b": jnp.zeros((1, H), jnp.float32),
        "w1": scale * jax.random.normal(ks[4], (H, FF), jnp.float32),
        "b1": jnp.zeros((1, FF), jnp.float32),
        "w2": scale * jax.random.normal(ks[5], (FF, H), jnp.float32),
        "b2": jnp.zeros((1, H), jnp.float32),
        "lnfg": jnp.ones((1, H), jnp.float32), "lnfb": jnp.zeros((1, H), jnp.float32),
    }


def pack_params(params):
    """One-time pre-packing: bf16 casts, fused QKV (1/sqrt(HD) folded into Q),
    and all [1,H]/[1,FF] vectors packed into a single [16,128] slab."""
    bf = jnp.bfloat16
    att_scale = jnp.float32(1.0 / (HD ** 0.5))

    wq, wk, wv = jnp.split(params["wqkv"], 3, axis=1)
    bq, bk, bv = jnp.split(params["bqkv"], 3, axis=1)
    wqkv = jnp.concatenate([wq * att_scale, wk, wv], axis=1).astype(bf)   # [H, 3H]
    bqkv = jnp.concatenate([bq * att_scale, bk, bv], axis=1)              # [1, 3H] f32

    slab = jnp.zeros((SLAB_ROWS, 128), jnp.float32)

    def put(s, row, vec):
        vec = vec.reshape(-1)
        return s.at[row, :vec.shape[0]].set(vec)

    slab = put(slab, ROW_LN1G, params["ln1g"])
    slab = put(slab, ROW_LN1B, params["ln1b"])
    slab = put(slab, ROW_LN2G, params["ln2g"])
    slab = put(slab, ROW_LN2B, params["ln2b"])
    slab = put(slab, ROW_LNFG, params["lnfg"])
    slab = put(slab, ROW_LNFB, params["lnfb"])
    slab = put(slab, ROW_BO, params["bo"])
    slab = put(slab, ROW_B2, params["b2"])
    slab = put(slab, ROW_BQKV, bqkv)
    slab = put(slab, ROW_B1, params["b1"])

    return {
        "wte": params["wte"], "wpe": params["wpe"],
        "wqkv": wqkv,
        "wo": params["wo"].astype(bf),
        "w1": params["w1"].astype(bf),
        "w2": params["w2"].astype(bf),
        "slab": slab,
    }


def gpt_pooled_forward(input_ids, attention_mask, packed):
    # XLA-side glue: embedding gather, positions, and tiny mask/bias prep.
    x = (packed["wte"][input_ids] + packed["wpe"][None, :, :]).reshape(T, H)   # [T, H] f32
    maskf = attention_mask.astype(jnp.float32)                                  # [B, S]
    mask_flat = maskf.reshape(T)

    # Block-diagonal additive attention bias [T, T]:
    # 0 where same batch AND causal AND key not padded; -1e9 otherwise
    # (cross-batch blocks are -1e9 so flattened tokens never attend across batches).
    tok_b = jnp.arange(T) // S
    tok_p = jnp.arange(T) % S
    same_batch = tok_b[:, None] == tok_b[None, :]
    causal = tok_p[None, :] <= tok_p[:, None]
    key_ok = mask_flat[None, :] > 0.0
    allowed = same_batch & causal & key_ok
    bias = jnp.where(allowed, 0.0, -1e9).astype(jnp.float32)                    # [T, T]

    # Pooling weights [B, T]: batch selector * attention_mask * arange(1..S).
    poolw = ((tok_b[None, :] == jnp.arange(B)[:, None]).astype(jnp.float32)
             * (mask_flat * (tok_p + 1).astype(jnp.float32))[None, :])          # [B, T]

    # Single gridless invocation: every operand + output is whole-array VMEM resident.
    # TODO(synk): at real GPT sizes / v7x, tile over sequence with BlockSpecs and a
    # parallel grid axis so both TensorCores are used; unnecessary at this size.
    return pl.pallas_call(
        gpt_pool_kernel,
        out_shape=jax.ShapeDtypeStruct((B, H), jnp.float32),
    )(x, bias, poolw, packed["slab"],
      packed["wqkv"], packed["wo"], packed["w1"], packed["w2"])


if __name__ == "__main__":
    key = jax.random.PRNGKey(0)
    pkey, ikey = jax.random.split(key)
    params = init_params(pkey)
    packed = pack_params(params)     # one-time weight packing, outside the per-call path

    input_ids = jax.random.randint(ikey, (B, S), 0, VOCAB, dtype=jnp.int32)
    # Batch 0: all real tokens; batch 1: last 3 positions padded.
    attention_mask = jnp.array([[1] * S, [1] * (S - 3) + [0] * 3], dtype=jnp.int32)

    pooled = gpt_pooled_forward(input_ids, attention_mask, packed)
    jax.block_until_ready(pooled)
    assert pooled.shape == (B, H) and pooled.dtype == jnp.float32
    assert bool(jnp.all(jnp.isfinite(pooled)))
    print("KERNEL_OK")
</pallas_src>

<mosaic_0001>
module attributes {stable_mosaic.version = 11 : i64} {
  func.func @gpt_pool_kernel(%arg0: memref<16x32xf32, #tpu.memory_space<vmem>>, %arg1: memref<16x16xf32, #tpu.memory_space<vmem>>, %arg2: memref<2x16xf32, #tpu.memory_space<vmem>>, %arg3: memref<16x128xf32, #tpu.memory_space<vmem>>, %arg4: memref<32x96xbf16, #tpu.memory_space<vmem>>, %arg5: memref<32x32xbf16, #tpu.memory_space<vmem>>, %arg6: memref<32x128xbf16, #tpu.memory_space<vmem>>, %arg7: memref<128x32xbf16, #tpu.memory_space<vmem>>, %arg8: memref<2x32xf32, #tpu.memory_space<vmem>>) attributes {dimension_semantics = [], scalar_prefetch = 0 : i64, scratch_operands = 0 : i64, tpu.core_type = #tpu.core_type<tc>} {
    %c0 = arith.constant 0 : index
    %c0_0 = arith.constant 0 : index
    %0 = vector.load %arg0[%c0, %c0_0] : memref<16x32xf32, #tpu.memory_space<vmem>>, vector<16x32xf32>
    %c0_1 = arith.constant 0 : index
    %c0_2 = arith.constant 0 : index
    %1 = vector.load %arg1[%c0_1, %c0_2] : memref<16x16xf32, #tpu.memory_space<vmem>>, vector<16x16xf32>
    %c0_3 = arith.constant 0 : index
    %c0_4 = arith.constant 0 : index
    %2 = vector.load %arg2[%c0_3, %c0_4] : memref<2x16xf32, #tpu.memory_space<vmem>>, vector<2x16xf32>
    %c0_5 = arith.constant 0 : index
    %c0_6 = arith.constant 0 : index
    %3 = vector.load %arg3[%c0_5, %c0_6] : memref<16x128xf32, #tpu.memory_space<vmem>>, vector<16x128xf32>
    %4 = vector.extract_strided_slice %3 {offsets = [0, 0], sizes = [1, 32], strides = [1, 1]} : vector<16x128xf32> to vector<1x32xf32>
    %5 = vector.extract_strided_slice %3 {offsets = [1, 0], sizes = [1, 32], strides = [1, 1]} : vector<16x128xf32> to vector<1x32xf32>
    %6 = vector.extract_strided_slice %3 {offsets = [2, 0], sizes = [1, 32], strides = [1, 1]} : vector<16x128xf32> to vector<1x32xf32>
    %7 = vector.extract_strided_slice %3 {offsets = [3, 0], sizes = [1, 32], strides = [1, 1]} : vector<16x128xf32> to vector<1x32xf32>
    %8 = vector.extract_strided_slice %3 {offsets = [4, 0], sizes = [1, 32], strides = [1, 1]} : vector<16x128xf32> to vector<1x32xf32>
    %9 = vector.extract_strided_slice %3 {offsets = [5, 0], sizes = [1, 32], strides = [1, 1]} : vector<16x128xf32> to vector<1x32xf32>
    %10 = vector.extract_strided_slice %3 {offsets = [6, 0], sizes = [1, 32], strides = [1, 1]} : vector<16x128xf32> to vector<1x32xf32>
    %11 = vector.extract_strided_slice %3 {offsets = [7, 0], sizes = [1, 32], strides = [1, 1]} : vector<16x128xf32> to vector<1x32xf32>
    %12 = vector.extract_strided_slice %3 {offsets = [8, 0], sizes = [1, 96], strides = [1, 1]} : vector<16x128xf32> to vector<1x96xf32>
    %13 = vector.extract_strided_slice %3 {offsets = [9, 0], sizes = [1, 128], strides = [1, 1]} : vector<16x128xf32> to vector<1x128xf32>
    %cst = arith.constant dense<0.000000e+00> : vector<16xf32>
    %14 = vector.multi_reduction <add>, %0, %cst [1] : vector<16x32xf32> to vector<16xf32>
    %15 = vector.shape_cast %14 : vector<16xf32> to vector<16x1xf32>
    %cst_7 = arith.constant 3.200000e+01 : f32
    %16 = vector.broadcast %cst_7 : f32 to vector<16x1xf32>
    %17 = arith.divf %15, %16 : vector<16x1xf32>
    %18 = vector.broadcast %17 : vector<16x1xf32> to vector<16x32xf32>
    %19 = arith.subf %0, %18 : vector<16x32xf32>
    %20 = arith.mulf %19, %19 : vector<16x32xf32>
    %cst_8 = arith.constant dense<0.000000e+00> : vector<16xf32>
    %21 = vector.multi_reduction <add>, %20, %cst_8 [1] : vector<16x32xf32> to vector<16xf32>
    %22 = vector.shape_cast %21 : vector<16xf32> to vector<16x1xf32>
    %cst_9 = arith.constant 3.200000e+01 : f32
    %23 = vector.broadcast %cst_9 : f32 to vector<16x1xf32>
    %24 = arith.divf %22, %23 : vector<16x1xf32>
    %25 = vector.broadcast %17 : vector<16x1xf32> to vector<16x32xf32>
    %26 = arith.subf %0, %25 : vector<16x32xf32>
    %cst_10 = arith.constant 9.99999974E-6 : f32
    %27 = vector.broadcast %cst_10 : f32 to vector<16x1xf32>
    %28 = arith.addf %24, %27 : vector<16x1xf32>
    %29 = math.rsqrt %28 : vector<16x1xf32>
    %30 = vector.broadcast %29 : vector<16x1xf32> to vector<16x32xf32>
    %31 = arith.mulf %26, %30 : vector<16x32xf32>
    %32 = vector.broadcast %4 : vector<1x32xf32> to vector<16x32xf32>
    %33 = arith.mulf %31, %32 : vector<16x32xf32>
    %34 = vector.broadcast %5 : vector<1x32xf32> to vector<16x32xf32>
    %35 = arith.addf %33, %34 : vector<16x32xf32>
    %36 = arith.truncf %35 : vector<16x32xf32> to vector<16x32xbf16>
    %c0_11 = arith.constant 0 : index
    %c0_12 = arith.constant 0 : index
    %37 = vector.load %arg4[%c0_11, %c0_12] : memref<32x96xbf16, #tpu.memory_space<vmem>>, vector<32x96xbf16>
    %cst_13 = arith.constant dense<0.000000e+00> : vector<16x96xf32>
    %38 = tpu.matmul %36, %37, %cst_13 {dimension_numbers = #tpu.dot_dimension_numbers<[1], [0], [0], [1], [0, 0, 1, 1], [], []>} : vector<16x32xbf16>, vector<32x96xbf16>, vector<16x96xf32> -> vector<16x96xf32>
    %39 = vector.broadcast %12 : vector<1x96xf32> to vector<16x96xf32>
    %40 = arith.addf %38, %39 : vector<16x96xf32>
    %41 = vector.extract_strided_slice %40 {offsets = [0, 0], sizes = [16, 32], strides = [1, 1]} : vector<16x96xf32> to vector<16x32xf32>
    %42 = vector.extract_strided_slice %40 {offsets = [0, 32], sizes = [16, 32], strides = [1, 1]} : vector<16x96xf32> to vector<16x32xf32>
    %43 = vector.extract_strided_slice %40 {offsets = [0, 64], sizes = [16, 32], strides = [1, 1]} : vector<16x96xf32> to vector<16x32xf32>
    %44 = arith.truncf %41 : vector<16x32xf32> to vector<16x32xbf16>
    %45 = tpu.iota {dimensions = array<i32: 1>} : vector<1x32xi32>
    %c0_i32 = arith.constant 0 : i32
    %46 = vector.broadcast %c0_i32 : i32 to vector<1x32xi32>
    %47 = arith.cmpi sge, %45, %46 : vector<1x32xi32>
    %c16_i32 = arith.constant 16 : i32
    %48 = vector.broadcast %c16_i32 : i32 to vector<1x32xi32>
    %49 = arith.cmpi slt, %45, %48 : vector<1x32xi32>
    %50 = arith.andi %47, %49 : vector<1x32xi1>
    %51 = arith.extui %50 : vector<1x32xi1> to vector<1x32xi32>
    %52 = arith.sitofp %51 : vector<1x32xi32> to vector<1x32xf32>
    %53 = vector.broadcast %52 : vector<1x32xf32> to vector<16x32xf32>
    %54 = arith.mulf %42, %53 : vector<16x32xf32>
    %55 = arith.truncf %54 : vector<16x32xf32> to vector<16x32xbf16>
    %56 = vector.broadcast %52 : vector<1x32xf32> to vector<16x32xf32>
    %57 = arith.mulf %43, %56 : vector<16x32xf32>
    %58 = arith.truncf %57 : vector<16x32xf32> to vector<16x32xbf16>
    %59 = tpu.transpose %55, [1, 0] : vector<16x32xbf16> -> vector<32x16xbf16>
    %cst_14 = arith.constant dense<0.000000e+00> : vector<16x16xf32>
    %60 = tpu.matmul %44, %59, %cst_14 {dimension_numbers = #tpu.dot_dimension_numbers<[1], [0], [0], [1], [0, 0, 1, 1], [], []>} : vector<16x32xbf16>, vector<32x16xbf16>, vector<16x16xf32> -> vector<16x16xf32>
    %61 = arith.addf %60, %1 : vector<16x16xf32>
    %cst_15 = arith.constant dense<0xFF800000> : vector<16xf32>
    %62 = vector.multi_reduction <maximumf>, %61, %cst_15 [1] : vector<16x16xf32> to vector<16xf32>
    %63 = vector.shape_cast %62 : vector<16xf32> to vector<16x1xf32>
    %64 = vector.broadcast %63 : vector<16x1xf32> to vector<16x16xf32>
    %65 = arith.subf %61, %64 : vector<16x16xf32>
    %66 = math.exp %65 : vector<16x16xf32>
    %cst_16 = arith.constant dense<0.000000e+00> : vector<16xf32>
    %67 = vector.multi_reduction <add>, %66, %cst_16 [1] : vector<16x16xf32> to vector<16xf32>
    %68 = vector.shape_cast %67 : vector<16xf32> to vector<16x1xf32>
    %69 = tpu.reciprocal %68 {approx = true} : vector<16x1xf32> -> vector<16x1xf32>
    %70 = vector.broadcast %69 : vector<16x1xf32> to vector<16x16xf32>
    %71 = arith.mulf %66, %70 : vector<16x16xf32>
    %72 = arith.truncf %71 : vector<16x16xf32> to vector<16x16xbf16>
    %cst_17 = arith.constant dense<0.000000e+00> : vector<16x32xf32>
    %73 = tpu.matmul %72, %58, %cst_17 {dimension_numbers = #tpu.dot_dimension_numbers<[1], [0], [0], [1], [0, 0, 1, 1], [], []>} : vector<16x16xbf16>, vector<16x32xbf16>, vector<16x32xf32> -> vector<16x32xf32>
    %c16_i32_18 = arith.constant 16 : i32
    %74 = vector.broadcast %c16_i32_18 : i32 to vector<1x32xi32>
    %75 = arith.cmpi sge, %45, %74 : vector<1x32xi32>
    %c32_i32 = arith.constant 32 : i32
    %76 = vector.broadcast %c32_i32 : i32 to vector<1x32xi32>
    %77 = arith.cmpi slt, %45, %76 : vector<1x32xi32>
    %78 = arith.andi %75, %77 : vector<1x32xi1>
    %79 = arith.extui %78 : vector<1x32xi1> to vector<1x32xi32>
    %80 = arith.sitofp %79 : vector<1x32xi32> to vector<1x32xf32>
    %81 = vector.broadcast %80 : vector<1x32xf32> to vector<16x32xf32>
    %82 = arith.mulf %42, %81 : vector<16x32xf32>
    %83 = arith.truncf %82 : vector<16x32xf32> to vector<16x32xbf16>
    %84 = vector.broadcast %80 : vector<1x32xf32> to vector<16x32xf32>
    %85 = arith.mulf %43, %84 : vector<16x32xf32>
    %86 = arith.truncf %85 : vector<16x32xf32> to vector<16x32xbf16>
    %87 = tpu.transpose %83, [1, 0] : vector<16x32xbf16> -> vector<32x16xbf16>
    %cst_19 = arith.constant dense<0.000000e+00> : vector<16x16xf32>
    %88 = tpu.matmul %44, %87, %cst_19 {dimension_numbers = #tpu.dot_dimension_numbers<[1], [0], [0], [1], [0, 0, 1, 1], [], []>} : vector<16x32xbf16>, vector<32x16xbf16>, vector<16x16xf32> -> vector<16x16xf32>
    %89 = arith.addf %88, %1 : vector<16x16xf32>
    %cst_20 = arith.constant dense<0xFF800000> : vector<16xf32>
    %90 = vector.multi_reduction <maximumf>, %89, %cst_20 [1] : vector<16x16xf32> to vector<16xf32>
    %91 = vector.shape_cast %90 : vector<16xf32> to vector<16x1xf32>
    %92 = vector.broadcast %91 : vector<16x1xf32> to vector<16x16xf32>
    %93 = arith.subf %89, %92 : vector<16x16xf32>
    %94 = math.exp %93 : vector<16x16xf32>
    %cst_21 = arith.constant dense<0.000000e+00> : vector<16xf32>
    %95 = vector.multi_reduction <add>, %94, %cst_21 [1] : vector<16x16xf32> to vector<16xf32>
    %96 = vector.shape_cast %95 : vector<16xf32> to vector<16x1xf32>
    %97 = tpu.reciprocal %96 {approx = true} : vector<16x1xf32> -> vector<16x1xf32>
    %98 = vector.broadcast %97 : vector<16x1xf32> to vector<16x16xf32>
    %99 = arith.mulf %94, %98 : vector<16x16xf32>
    %100 = arith.truncf %99 : vector<16x16xf32> to vector<16x16xbf16>
    %cst_22 = arith.constant dense<0.000000e+00> : vector<16x32xf32>
    %101 = tpu.matmul %100, %86, %cst_22 {dimension_numbers = #tpu.dot_dimension_numbers<[1], [0], [0], [1], [0, 0, 1, 1], [], []>} : vector<16x16xbf16>, vector<16x32xbf16>, vector<16x32xf32> -> vector<16x32xf32>
    %102 = arith.addf %73, %101 : vector<16x32xf32>
    %103 = arith.truncf %102 : vector<16x32xf32> to vector<16x32xbf16>
    %c0_23 = arith.constant 0 : index
    %c0_24 = arith.constant 0 : index
    %104 = vector.load %arg5[%c0_23, %c0_24] : memref<32x32xbf16, #tpu.memory_space<vmem>>, vector<32x32xbf16>
    %cst_25 = arith.constant dense<0.000000e+00> : vector<16x32xf32>
    %105 = tpu.matmul %103, %104, %cst_25 {dimension_numbers = #tpu.dot_dimension_numbers<[1], [0], [0], [1], [0, 0, 1, 1], [], []>} : vector<16x32xbf16>, vector<32x32xbf16>, vector<16x32xf32> -> vector<16x32xf32>
    %106 = vector.broadcast %10 : vector<1x32xf32> to vector<16x32xf32>
    %107 = arith.addf %105, %106 : vector<16x32xf32>
    %108 = arith.addf %0, %107 : vector<16x32xf32>
    %cst_26 = arith.constant dense<0.000000e+00> : vector<16xf32>
    %109 = vector.multi_reduction <add>, %108, %cst_26 [1] : vector<16x32xf32> to vector<16xf32>
    %110 = vector.shape_cast %109 : vector<16xf32> to vector<16x1xf32>
    %cst_27 = arith.constant 3.200000e+01 : f32
    %111 = vector.broadcast %cst_27 : f32 to vector<16x1xf32>
    %112 = arith.divf %110, %111 : vector<16x1xf32>
    %113 = vector.broadcast %112 : vector<16x1xf32> to vector<16x32xf32>
    %114 = arith.subf %108, %113 : vector<16x32xf32>
    %115 = arith.mulf %114, %114 : vector<16x32xf32>
    %cst_28 = arith.constant dense<0.000000e+00> : vector<16xf32>
    %116 = vector.multi_reduction <add>, %115, %cst_28 [1] : vector<16x32xf32> to vector<16xf32>
    %117 = vector.shape_cast %116 : vector<16xf32> to vector<16x1xf32>
    %cst_29 = arith.constant 3.200000e+01 : f32
    %118 = vector.broadcast %cst_29 : f32 to vector<16x1xf32>
    %119 = arith.divf %117, %118 : vector<16x1xf32>
    %120 = vector.broadcast %112 : vector<16x1xf32> to vector<16x32xf32>
    %121 = arith.subf %108, %120 : vector<16x32xf32>
    %cst_30 = arith.constant 9.99999974E-6 : f32
    %122 = vector.broadcast %cst_30 : f32 to vector<16x1xf32>
    %123 = arith.addf %119, %122 : vector<16x1xf32>
    %124 = math.rsqrt %123 : vector<16x1xf32>
    %125 = vector.broadcast %124 : vector<16x1xf32> to vector<16x32xf32>
    %126 = arith.mulf %121, %125 : vector<16x32xf32>
    %127 = vector.broadcast %6 : vector<1x32xf32> to vector<16x32xf32>
    %128 = arith.mulf %126, %127 : vector<16x32xf32>
    %129 = vector.broadcast %7 : vector<1x32xf32> to vector<16x32xf32>
    %130 = arith.addf %128, %129 : vector<16x32xf32>
    %131 = arith.truncf %130 : vector<16x32xf32> to vector<16x32xbf16>
    %c0_31 = arith.constant 0 : index
    %c0_32 = arith.constant 0 : index
    %132 = vector.load %arg6[%c0_31, %c0_32] : memref<32x128xbf16, #tpu.memory_space<vmem>>, vector<32x128xbf16>
    %cst_33 = arith.constant dense<0.000000e+00> : vector<16x128xf32>
    %133 = tpu.matmul %131, %132, %cst_33 {dimension_numbers = #tpu.dot_dimension_numbers<[1], [0], [0], [1], [0, 0, 1, 1], [], []>} : vector<16x32xbf16>, vector<32x128xbf16>, vector<16x128xf32> -> vector<16x128xf32>
    %134 = vector.broadcast %13 : vector<1x128xf32> to vector<16x128xf32>
    %135 = arith.addf %133, %134 : vector<16x128xf32>
    %136 = arith.mulf %135, %135 : vector<16x128xf32>
    %137 = arith.mulf %135, %136 : vector<16x128xf32>
    %cst_34 = arith.constant 4.471500e-02 : f32
    %138 = vector.broadcast %cst_34 : f32 to vector<16x128xf32>
    %139 = arith.mulf %138, %137 : vector<16x128xf32>
    %140 = arith.addf %135, %139 : vector<16x128xf32>
    %cst_35 = arith.constant 0.797884583 : f32
    %141 = vector.broadcast %cst_35 : f32 to vector<16x128xf32>
    %142 = arith.mulf %141, %140 : vector<16x128xf32>
    %143 = math.tanh %142 : vector<16x128xf32>
    %cst_36 = arith.constant 1.000000e+00 : f32
    %144 = vector.broadcast %cst_36 : f32 to vector<16x128xf32>
    %145 = arith.addf %144, %143 : vector<16x128xf32>
    %cst_37 = arith.constant 5.000000e-01 : f32
    %146 = vector.broadcast %cst_37 : f32 to vector<16x128xf32>
    %147 = arith.mulf %146, %145 : vector<16x128xf32>
    %148 = arith.mulf %135, %147 : vector<16x128xf32>
    %149 = arith.truncf %148 : vector<16x128xf32> to vector<16x128xbf16>
    %c0_38 = arith.constant 0 : index
    %c0_39 = arith.constant 0 : index
    %150 = vector.load %arg7[%c0_38, %c0_39] : memref<128x32xbf16, #tpu.memory_space<vmem>>, vector<128x32xbf16>
    %cst_40 = arith.constant dense<0.000000e+00> : vector<16x32xf32>
    %151 = tpu.matmul %149, %150, %cst_40 {dimension_numbers = #tpu.dot_dimension_numbers<[1], [0], [0], [1], [0, 0, 1, 1], [], []>} : vector<16x128xbf16>, vector<128x32xbf16>, vector<16x32xf32> -> vector<16x32xf32>
    %152 = vector.broadcast %11 : vector<1x32xf32> to vector<16x32xf32>
    %153 = arith.addf %151, %152 : vector<16x32xf32>
    %154 = arith.addf %108, %153 : vector<16x32xf32>
    %cst_41 = arith.constant dense<0.000000e+00> : vector<16xf32>
    %155 = vector.multi_reduction <add>, %154, %cst_41 [1] : vector<16x32xf32> to vector<16xf32>
    %156 = vector.shape_cast %155 : vector<16xf32> to vector<16x1xf32>
    %cst_42 = arith.constant 3.200000e+01 : f32
    %157 = vector.broadcast %cst_42 : f32 to vector<16x1xf32>
    %158 = arith.divf %156, %157 : vector<16x1xf32>
    %159 = vector.broadcast %158 : vector<16x1xf32> to vector<16x32xf32>
    %160 = arith.subf %154, %159 : vector<16x32xf32>
    %161 = arith.mulf %160, %160 : vector<16x32xf32>
    %cst_43 = arith.constant dense<0.000000e+00> : vector<16xf32>
    %162 = vector.multi_reduction <add>, %161, %cst_43 [1] : vector<16x32xf32> to vector<16xf32>
    %163 = vector.shape_cast %162 : vector<16xf32> to vector<16x1xf32>
    %cst_44 = arith.constant 3.200000e+01 : f32
    %164 = vector.broadcast %cst_44 : f32 to vector<16x1xf32>
    %165 = arith.divf %163, %164 : vector<16x1xf32>
    %166 = vector.broadcast %158 : vector<16x1xf32> to vector<16x32xf32>
    %167 = arith.subf %154, %166 : vector<16x32xf32>
    %cst_45 = arith.constant 9.99999974E-6 : f32
    %168 = vector.broadcast %cst_45 : f32 to vector<16x1xf32>
    %169 = arith.addf %165, %168 : vector<16x1xf32>
    %170 = math.rsqrt %169 : vector<16x1xf32>
    %171 = vector.broadcast %170 : vector<16x1xf32> to vector<16x32xf32>
    %172 = arith.mulf %167, %171 : vector<16x32xf32>
    %173 = vector.broadcast %8 : vector<1x32xf32> to vector<16x32xf32>
    %174 = arith.mulf %172, %173 : vector<16x32xf32>
    %175 = vector.broadcast %9 : vector<1x32xf32> to vector<16x32xf32>
    %176 = arith.addf %174, %175 : vector<16x32xf32>
    %cst_46 = arith.constant dense<0.000000e+00> : vector<2x32xf32>
    %177 = tpu.matmul %2, %176, %cst_46 {dimension_numbers = #tpu.dot_dimension_numbers<[1], [0], [0], [1], [0, 0, 1, 1], [], []>} : vector<2x16xf32>, vector<16x32xf32>, vector<2x32xf32> -> vector<2x32xf32>
    %cst_47 = arith.constant dense<0.000000e+00> : vector<2xf32>
    %178 = vector.multi_reduction <add>, %2, %cst_47 [1] : vector<2x16xf32> to vector<2xf32>
    %179 = vector.shape_cast %178 : vector<2xf32> to vector<2x1xf32>
    %cst_48 = arith.constant 9.99999971E-10 : f32
    %180 = vector.broadcast %cst_48 : f32 to vector<2x1xf32>
    %181 = arith.maximumf %179, %180 : vector<2x1xf32>
    %182 = vector.broadcast %181 : vector<2x1xf32> to vector<2x32xf32>
    %183 = arith.divf %177, %182 : vector<2x32xf32>
    %c0_49 = arith.constant 0 : index
    %c0_50 = arith.constant 0 : index
    %184 = vector.load %arg8[%c0_49, %c0_50] : memref<2x32xf32, #tpu.memory_space<vmem>>, vector<2x32xf32>
    tpu.vector_store %arg8[%c0_49, %c0_50], %183 {strides = array<i32>} : memref<2x32xf32, #tpu.memory_space<vmem>>, vector<2x32xf32>,
    return
  }
}

</mosaic_0001>

<llo_original>
// kernel: tpu_custom_call.1
$region0: #{tpu_custom_call.1}
  #allocation0 [shape = 'u32[]', space=smem, size = 0x4, offset = 0x4, fixed_abs, tag = 'smem constant byte address 0x4 - core index']
  #allocation1 [shape = 'u32[144,128]{1,0:T(1,128)}', space=vmem, size = 0x12000, scoped, tag = 'internal scratch']
  %s0 = inlined_call_operand.vmem [shape: f32[16,32], index: 0, kind: input, shape index: {}]
  %s1 = inlined_call_operand.vmem [shape: f32[16,16], index: 1, kind: input, shape index: {}]
  %s2 = inlined_call_operand.vmem [shape: f32[2,16], index: 2, kind: input, shape index: {}]
  %s3 = inlined_call_operand.vmem [shape: f32[16,128], index: 3, kind: input, shape index: {}]
  %s4 = inlined_call_operand.vmem [shape: bf16[32,96], index: 4, kind: input, shape index: {}]
  %s5 = inlined_call_operand.vmem [shape: bf16[32,32], index: 5, kind: input, shape index: {}]
  %s6 = inlined_call_operand.hbm [shape: bf16[32,128], index: 6, kind: input, shape index: {}]
  %s7 = inlined_call_operand.vmem [shape: bf16[128,32], index: 7, kind: input, shape index: {}]
  %s8 = inlined_call_operand.hbm [shape: f32[2,32], index: 8, kind: output, shape index: {}]
  %s9 = sld [smem:[#allocation0]]
  $region46: #{tpu_custom_call.1} parent=0
    _
  %s11 = ssub.s32 1, %s9
  %s12 = scalar_select 0, %s11, %s9
  $region1: #{tpu_custom_call.1} parent=0
    #allocation2 [shape = 'u8[8192]{0}', space=vmem, size = 0x2000, scoped, tag = 'input window, operand 6, single buffered']
    #allocation3 [shape = 's32[1]{0}', space=sflag, size = 0x4, scoped, tag = 'scoped memory for tpu_custom_call.1']
    #allocation4 [shape = 's32[1]{0}', space=sflag, size = 0x4, scoped, tag = 'scoped memory for tpu_custom_call.1']
    #allocation5 [shape = 'u8[1024]{0}', space=vmem, size = 0x400, scoped, tag = 'output window, operand 0, single buffered']
    %13 = vsyncpa [#allocation3], 0
    %14 = vsyncpa [#allocation4], 0
    // Predicated region
    $region2: #{tpu_custom_call.1} parent=1 // pred_check
      _
    $region3: #{tpu_custom_call.1} parent=1 // pred_check_branch
      %16 = sbr.rel (0) target = $region5
    $region4: #{tpu_custom_call.1} parent=1 // pred_region
      _
    $region5: #{tpu_custom_call.1} parent=1 // pred_fallthru
      _
    // Predicated region
    $region6: #{tpu_custom_call.1} parent=1 // pred_check
      _
    $region7: #{tpu_custom_call.1} parent=1 // pred_check_branch
      %18 = sbr.rel (0) target = $region9
    $region8: #{tpu_custom_call.1} parent=1 // pred_region
      _
    $region9: #{tpu_custom_call.1} parent=1 // pred_fallthru
      _
    // Predicated region
    $region10: #{tpu_custom_call.1} parent=1 // pred_check
      _
    $region11: #{tpu_custom_call.1} parent=1 // pred_check_branch
      %20 = sbr.rel (0) target = $region13
    $region12: #{tpu_custom_call.1} parent=1 // pred_region
      _
    $region13: #{tpu_custom_call.1} parent=1 // pred_fallthru
      _
    // Predicated region
    $region14: #{tpu_custom_call.1} parent=1 // pred_check
      _
    $region15: #{tpu_custom_call.1} parent=1 // pred_check_branch
      %22 = sbr.rel (0) target = $region17
    $region16: #{tpu_custom_call.1} parent=1 // pred_region
      _
    $region17: #{tpu_custom_call.1} parent=1 // pred_fallthru
      _
    // Predicated region
    $region18: #{tpu_custom_call.1} parent=1 // pred_check
      _
    $region19: #{tpu_custom_call.1} parent=1 // pred_check_branch
      %24 = sbr.rel (0) target = $region21
    $region20: #{tpu_custom_call.1} parent=1 // pred_region
      _
    $region21: #{tpu_custom_call.1} parent=1 // pred_fallthru
      _
    // Predicated region
    $region22: #{tpu_custom_call.1} parent=1 // pred_check
      _
    $region23: #{tpu_custom_call.1} parent=1 // pred_check_branch
      %26 = sbr.rel (0) target = $region25
    $region24: #{tpu_custom_call.1} parent=1 // pred_region
      _
    $region25: #{tpu_custom_call.1} parent=1 // pred_fallthru
      _
    // Predicated region
    $region26: #{tpu_custom_call.1} parent=1 // pred_check
      _
    $region27: #{tpu_custom_call.1} parent=1 // pred_check_branch
      %28 = sbr.rel (0) target = $region29
    $region28: #{tpu_custom_call.1} parent=1 // pred_region
      %s30 = ssub.s32 256, 256
      %31 = vsyncadd [#allocation3], %s30
      %s32 = sshll.u32 [#allocation2], 4
      %s33 = int_to_ptr.vmem [resolvable:$true] %s32
      %38 = dma.hbm_to_vmem [thread:$0]  %s6, 256, %s33, [#allocation3], 64, 64, 4
    $region29: #{tpu_custom_call.1} parent=1 // pred_fallthru
      _
    // Predicated region
    $region30: #{tpu_custom_call.1} parent=1 // pred_check
      _
    $region31: #{tpu_custom_call.1} parent=1 // pred_check_branch
      %40 = sbr.rel (0) target = $region33
    $region32: #{tpu_custom_call.1} parent=1 // pred_region
      _
    $region33: #{tpu_custom_call.1} parent=1 // pred_fallthru
      _
    // Predicated region
    $region34: #{tpu_custom_call.1} parent=1 // pred_check
      _
    $region35: #{tpu_custom_call.1} parent=1 // pred_check_branch
      %42 = sbr.rel (0) target = $region37
    $region36: #{tpu_custom_call.1} parent=1 // pred_region
      %43 = dma.done [#allocation3], 256
    $region37: #{tpu_custom_call.1} parent=1 // pred_fallthru
      _
    %v45 = vld [vmem:[%s0] sm:$0xff]
    %v46 = vld [vmem:[%s0 + $0x8] sm:$0xff]
    %v47 = vld [vmem:[%s1] sm:$0xff]
    %v48 = vld [vmem:[%s1 + $0x8] sm:$0xff]
    %v49 = vld [vmem:[%s2] sm:$0x3]
    %v50 = vld [vmem:[%s3] sm:$0xff]
    %v51 = vld [vmem:[%s3 + $0x8] sm:$0xff]
    %vm52 = vcmask 261120
    %v53 = vsel %vm52, %v45, 0.0
    %54 = vadd.xlane.f32.xlu0 %v53
    %v55 = vpop.xlane.xlu0 %54
    %v56 = vsel %vm52, %v46, 0.0
    %57 = vadd.xlane.f32.xlu0 %v56
    %v58 = vpop.xlane.xlu0 %57
    %v59 = vrcp.pop 32.0
    %v60 = vmul.f32 %v55, %v59
    %v61 = vmul.f32 %v58, %v59
    %v62 = vsub.f32 %v45, %v60
    %v63 = vsub.f32 %v46, %v61
    %v64 = vmul.f32 %v62, %v62
    %v65 = vmul.f32 %v63, %v63
    %v66 = vsel %vm52, %v64, 0.0
    %67 = vadd.xlane.f32.xlu0 %v66
    %v68 = vpop.xlane.xlu0 %67
    %v69 = vsel %vm52, %v65, 0.0
    %70 = vadd.xlane.f32.xlu0 %v69
    %v71 = vpop.xlane.xlu0 %70
    %v72 = vmul.f32 %v68, %v59
    %v73 = vmul.f32 %v71, %v59
    %v74 = vadd.f32 %v72, 1e-05
    %v75 = vadd.f32 %v73, 1e-05
    %v76 = vrsqrt.pop %v74
    %v77 = vrsqrt.pop %v75
    %v78 = vmul.f32 %v62, %v76
    %v79 = vmul.f32 %v63, %v77
    %v80 = vlaneseq
    %v81 = vshrl.u32 %v80, 7
    %v82 = vsub.s32 0, %v81
    %v83 = vrot.slane %v50, %v82
    %v84 = vmul.f32 %v78, %v83
    %v85 = vmul.f32 %v79, %v83
    %v86 = vlaneseq
    %v87 = vshrl.u32 %v86, 7
    %v88 = vsub.s32 1, %v87
    %v89 = vrot.slane %v50, %v88
    %v90 = vadd.f32 %v84, %v89
    %v91 = vadd.f32 %v85, %v89
    %v92 = vpack.c.bf16 %v91, %v90
    %v93 = vld [vmem:[%s4] sm:$0xf]
    %v94 = vld [vmem:[%s4 + $0x4] sm:$0xf]
    %v95 = vld [vmem:[%s4 + $0x8] sm:$0xf]
    %v96 = vld [vmem:[%s4 + $0xc] sm:$0xf]
    %v97 = vlaneseq
    %v98 = vshrl.u32 %v97, 7
    %v99 = vsub.s32 0, %v98
    %v100 = vrot.slane %v51, %v99
    %v105 = vunpack.c.l.b16 %v93
    %v106 = vunpack.c.l.b16 %v94
    %v107 = vunpack.c.l.b16 %v95
    %v108 = vunpack.c.l.b16 %v96
    %v109 = vpack.c.b16 %v106, %v105
    %v110 = vpack.c.b16 %v108, %v107
    %v114 = vsel %vm52, %v92, 0
    %116 = vmatprep.subr.bf16.mxu0 0
    %117 = vmatpush1.bf16.msra.mxu0 0
    %118 = vmatprep.subr.bf16.mxu0 0
    %119 = vmatpush1.bf16.msra.mxu0 0
    %120 = vmatprep.subr.bf16.mxu0 0
    %121 = vmatpush1.bf16.msra.mxu0 0
    %122 = vmatprep.subr.bf16.mxu0 0
    %123 = vmatpush1.bf16.msra.mxu0 0
    %124 = vmatprep.subr.bf16.mxu0 0
    %125 = vmatpush1.bf16.msra.mxu0 0
    %126 = vmatprep.subr.bf16.mxu0 0
    %127 = vmatpush1.bf16.msra.mxu0 0
    %128 = vmatprep.subr.bf16.mxu0 0
    %129 = vmatpush1.bf16.msra.mxu0 %v110
    %130 = vmatprep.subr.bf16.mxu0 0
    %131 = vmatpush1.bf16.msra.mxu0 %v109
    %132 = vmatprep.subr.bf16.mxu0 0
    %133 = vmatpush2.bf16.msra.mxu0 0
    %134 = vmatprep.subr.bf16.mxu0 0
    %135 = vmatpush2.bf16.msra.mxu0 0
    %136 = vmatprep.subr.bf16.mxu0 0
    %137 = vmatpush2.bf16.msra.mxu0 0
    %138 = vmatprep.subr.bf16.mxu0 0
    %139 = vmatpush2.bf16.msra.mxu0 0
    %140 = vmatprep.subr.bf16.mxu0 0
    %141 = vmatpush2.bf16.msra.mxu0 0
    %142 = vmatprep.subr.bf16.mxu0 0
    %143 = vmatpush2.bf16.msra.mxu0 0
    %144 = vmatprep.subr.bf16.mxu0 0
    %145 = vmatpush2.bf16.msra.mxu0 0
    %146 = vmatprep.subr.bf16.mxu0 0
    %147 = vmatpush2.bf16.msra.mxu0 0
    %148 = vmatprep.mubr.bf16.mxu0 0
    %149 = vmatmul.mubr.bf16.gmra.mxu0 %v114
    %v150 = vpop.f32.mrf.mxu0
    %v151 = vadd.f32 %v100, %v150
    %v152 = vpop.f32.mrf.mxu0
    %v153 = vpop.f32.mrf.mxu0
    %v154 = vadd.f32 %v100, %v153
    %v155 = vpop.f32.mrf.mxu0
    %156 = vdwg.mxu0
    %v157 = vpack.c.bf16 %v154, %v151
    %v158 = vlaneseq
    %v159 = vand.u32 %v158, 127
    %vm160 = vcmp.ge.s32.totalorder %v159, 0
    %vm161 = vcmp.lt.s32.totalorder %v159, 16
    %vm162 = vmand %vm160, %vm161
    %v163 = vsel %vm162, 1, 0
    %v164 = vcvt.s32.f32 %v163
    %166 = vrot.lane.b32.xlu0 %v164, 32
    %v167 = vpop.permute.xlu0 %166
    %v169 = vmul.f32 %v151, %v167
    %v170 = vmul.f32 %v154, %v167
    %v171 = vpack.c.bf16 %v170, %v169
    %172 = vrot.lane.b32.xlu0 %v164, 64
    %v173 = vpop.permute.xlu0 %172
    %v175 = vmul.f32 %v151, %v173
    %v176 = vmul.f32 %v154, %v173
    %v177 = vpack.c.bf16 %v176, %v175
    %179 = vrot.lane.b32.xlu0 %v171, 96
    %v180 = vpop.permute.xlu0 %179
    %v182 = vsel %vm52, %v157, 0
    %v185 = vsel %vm52, %v180, 0
    %187 = vmatprep.subr.bf16.mxu0 0
    %188 = vmatpush1.bf16.xpose.msra.mxu0 0
    %189 = vmatprep.subr.bf16.mxu0 0
    %190 = vmatpush1.bf16.xpose.msra.mxu0 0
    %191 = vmatprep.subr.bf16.mxu0 0
    %192 = vmatpush1.bf16.xpose.msra.mxu0 0
    %193 = vmatprep.subr.bf16.mxu0 0
    %194 = vmatpush1.bf16.xpose.msra.mxu0 0
    %195 = vmatprep.subr.bf16.mxu0 0
    %196 = vmatpush1.bf16.xpose.msra.mxu0 0
    %197 = vmatprep.subr.bf16.mxu0 0
    %198 = vmatpush1.bf16.xpose.msra.mxu0 0
    %199 = vmatprep.subr.bf16.mxu0 0
    %200 = vmatpush1.bf16.xpose.msra.mxu0 0
    %201 = vmatprep.subr.bf16.mxu0 0
    %202 = vmatpush1.bf16.xpose.msra.mxu0 %v185
    %203 = vmatprep.subr.bf16.mxu0 0
    %204 = vmatpush2.bf16.xpose.msra.mxu0 0
    %205 = vmatprep.subr.bf16.mxu0 0
    %206 = vmatpush2.bf16.xpose.msra.mxu0 0
    %207 = vmatprep.subr.bf16.mxu0 0
    %208 = vmatpush2.bf16.xpose.msra.mxu0 0
    %209 = vmatprep.subr.bf16.mxu0 0
    %210 = vmatpush2.bf16.xpose.msra.mxu0 0
    %211 = vmatprep.subr.bf16.mxu0 0
    %212 = vmatpush2.bf16.xpose.msra.mxu0 0
    %213 = vmatprep.subr.bf16.mxu0 0
    %214 = vmatpush2.bf16.xpose.msra.mxu0 0
    %215 = vmatprep.subr.bf16.mxu0 0
    %216 = vmatpush2.bf16.xpose.msra.mxu0 0
    %217 = vmatprep.subr.bf16.mxu0 0
    %218 = vmatpush2.bf16.xpose.msra.mxu0 0
    %219 = vmatprep.mubr.bf16.mxu0 0
    %220 = vmatmul.mubr.bf16.gmra.mxu0 %v182
    %v221 = vpop.f32.mrf.mxu0
    %v222 = vadd.f32 %v47, %v221
    %v223 = vpop.f32.mrf.mxu0
    %v224 = vpop.f32.mrf.mxu0
    %v225 = vadd.f32 %v48, %v224
    %v226 = vpop.f32.mrf.mxu0
    %227 = vdwg.mxu0
    %vm228 = vcmask 130048
    %v229 = vsel %vm228, %v222, -inf
    %230 = vmax.xlane.f32.xlu0 %v229
    %v231 = vpop.xlane.xlu0 %230
    %v232 = vsel %vm228, %v225, -inf
    %233 = vmax.xlane.f32.xlu0 %v232
    %v234 = vpop.xlane.xlu0 %233
    %v235 = vsub.f32 %v222, %v231
    %v236 = vsub.f32 %v225, %v234
    %v237 = vmul.f32 %v235, 1.442695
    %v238 = vpow.pop %v237
    %v239 = vmul.f32 %v236, 1.442695
    %v240 = vpow.pop %v239
    %v241 = vsel %vm228, %v238, 0.0
    %242 = vadd.xlane.f32.xlu0 %v241
    %v243 = vpop.xlane.xlu0 %242
    %v244 = vsel %vm228, %v240, 0.0
    %245 = vadd.xlane.f32.xlu0 %v244
    %v246 = vpop.xlane.xlu0 %245
    %v247 = vrcp.pop %v243
    %v248 = vrcp.pop %v246
    %v249 = vmul.f32 %v238, %v247
    %v250 = vmul.f32 %v240, %v248
    %v251 = vpack.c.bf16 %v250, %v249
    %vm252 = vcmp.ge.s32.totalorder %v159, 16
    %vm253 = vcmp.lt.s32.totalorder %v159, 32
    %vm254 = vmand %vm252, %vm253
    %v255 = vsel %vm254, 1, 0
    %v256 = vcvt.s32.f32 %v255
    %258 = vrot.lane.b32.xlu0 %v256, 32
    %v259 = vpop.permute.xlu0 %258
    %v261 = vmul.f32 %v151, %v259
    %v262 = vmul.f32 %v154, %v259
    %v263 = vpack.c.bf16 %v262, %v261
    %264 = vrot.lane.b32.xlu0 %v256, 64
    %v265 = vpop.permute.xlu0 %264
    %v267 = vmul.f32 %v151, %v265
    %v268 = vmul.f32 %v154, %v265
    %v269 = vpack.c.bf16 %v268, %v267
    %271 = vrot.lane.b32.xlu0 %v263, 96
    %v272 = vpop.permute.xlu0 %271
    %v274 = vsel %vm52, %v272, 0
    %276 = vmatprep.subr.bf16.mxu0 0
    %277 = vmatpush1.bf16.xpose.msra.mxu0 0
    %278 = vmatprep.subr.bf16.mxu0 0
    %279 = vmatpush1.bf16.xpose.msra.mxu0 0
    %280 = vmatprep.subr.bf16.mxu0 0
    %281 = vmatpush1.bf16.xpose.msra.mxu0 0
    %282 = vmatprep.subr.bf16.mxu0 0
    %283 = vmatpush1.bf16.xpose.msra.mxu0 0
    %284 = vmatprep.subr.bf16.mxu0 0
    %285 = vmatpush1.bf16.xpose.msra.mxu0 0
    %286 = vmatprep.subr.bf16.mxu0 0
    %287 = vmatpush1.bf16.xpose.msra.mxu0 0
    %288 = vmatprep.subr.bf16.mxu0 0
    %289 = vmatpush1.bf16.xpose.msra.mxu0 0
    %290 = vmatprep.subr.bf16.mxu0 0
    %291 = vmatpush1.bf16.xpose.msra.mxu0 %v274
    %292 = vmatprep.subr.bf16.mxu0 0
    %293 = vmatpush2.bf16.xpose.msra.mxu0 0
    %294 = vmatprep.subr.bf16.mxu0 0
    %295 = vmatpush2.bf16.xpose.msra.mxu0 0
    %296 = vmatprep.subr.bf16.mxu0 0
    %297 = vmatpush2.bf16.xpose.msra.mxu0 0
    %298 = vmatprep.subr.bf16.mxu0 0
    %299 = vmatpush2.bf16.xpose.msra.mxu0 0
    %300 = vmatprep.subr.bf16.mxu0 0
    %301 = vmatpush2.bf16.xpose.msra.mxu0 0
    %302 = vmatprep.subr.bf16.mxu0 0
    %303 = vmatpush2.bf16.xpose.msra.mxu0 0
    %304 = vmatprep.subr.bf16.mxu0 0
    %305 = vmatpush2.bf16.xpose.msra.mxu0 0
    %306 = vmatprep.subr.bf16.mxu0 0
    %307 = vmatpush2.bf16.xpose.msra.mxu0 0
    %308 = vmatprep.mubr.bf16.mxu0 0
    %309 = vmatmul.mubr.bf16.gmra.mxu0 %v182
    %v310 = vpop.f32.mrf.mxu0
    %v311 = vadd.f32 %v47, %v310
    %v312 = vpop.f32.mrf.mxu0
    %v313 = vpop.f32.mrf.mxu0
    %v314 = vadd.f32 %v48, %v313
    %v315 = vpop.f32.mrf.mxu0
    %316 = vdwg.mxu0
    %v317 = vsel %vm228, %v311, -inf
    %318 = vmax.xlane.f32.xlu0 %v317
    %v319 = vpop.xlane.xlu0 %318
    %v320 = vsel %vm228, %v314, -inf
    %321 = vmax.xlane.f32.xlu0 %v320
    %v322 = vpop.xlane.xlu0 %321
    %v323 = vsub.f32 %v311, %v319
    %v324 = vsub.f32 %v314, %v322
    %v325 = vmul.f32 %v323, 1.442695
    %v326 = vpow.pop %v325
    %v327 = vmul.f32 %v324, 1.442695
    %v328 = vpow.pop %v327
    %v329 = vsel %vm228, %v326, 0.0
    %330 = vadd.xlane.f32.xlu0 %v329
    %v331 = vpop.xlane.xlu0 %330
    %v332 = vsel %vm228, %v328, 0.0
    %333 = vadd.xlane.f32.xlu0 %v332
    %v334 = vpop.xlane.xlu0 %333
    %v335 = vrcp.pop %v331
    %v336 = vrcp.pop %v334
    %v337 = vmul.f32 %v326, %v335
    %v338 = vmul.f32 %v328, %v336
    %v339 = vpack.c.bf16 %v338, %v337
    %341 = vrot.lane.b32.xlu0 %v269, 64
    %v342 = vpop.permute.xlu0 %341
    %v345 = vsel %vm228, %v339, 0
    %347 = vmatprep.subr.bf16.mxu0 0
    %348 = vmatpush1.bf16.msra.mxu0 0
    %349 = vmatprep.subr.bf16.mxu0 0
    %350 = vmatpush1.bf16.msra.mxu0 0
    %351 = vmatprep.subr.bf16.mxu0 0
    %352 = vmatpush1.bf16.msra.mxu0 0
    %353 = vmatprep.subr.bf16.mxu0 0
    %354 = vmatpush1.bf16.msra.mxu0 0
    %355 = vmatprep.subr.bf16.mxu0 0
    %356 = vmatpush1.bf16.msra.mxu0 0
    %357 = vmatprep.subr.bf16.mxu0 0
    %358 = vmatpush1.bf16.msra.mxu0 0
    %359 = vmatprep.subr.bf16.mxu0 0
    %360 = vmatpush1.bf16.msra.mxu0 0
    %361 = vmatprep.subr.bf16.mxu0 0
    %362 = vmatpush1.bf16.msra.mxu0 %v342
    %363 = vmatprep.subr.bf16.mxu0 0
    %364 = vmatpush2.bf16.msra.mxu0 0
    %365 = vmatprep.subr.bf16.mxu0 0
    %366 = vmatpush2.bf16.msra.mxu0 0
    %367 = vmatprep.subr.bf16.mxu0 0
    %368 = vmatpush2.bf16.msra.mxu0 0
    %369 = vmatprep.subr.bf16.mxu0 0
    %370 = vmatpush2.bf16.msra.mxu0 0
    %371 = vmatprep.subr.bf16.mxu0 0
    %372 = vmatpush2.bf16.msra.mxu0 0
    %373 = vmatprep.subr.bf16.mxu0 0
    %374 = vmatpush2.bf16.msra.mxu0 0
    %375 = vmatprep.subr.bf16.mxu0 0
    %376 = vmatpush2.bf16.msra.mxu0 0
    %377 = vmatprep.subr.bf16.mxu0 0
    %378 = vmatpush2.bf16.msra.mxu0 0
    %379 = vmatprep.mubr.bf16.mxu0 0
    %380 = vmatmul.mubr.bf16.gmra.mxu0 %v345
    %v381 = vpop.f32.mrf.mxu0
    %v382 = vadd.f32 0.0, %v381
    %v383 = vpop.f32.mrf.mxu0
    %v384 = vpop.f32.mrf.mxu0
    %v385 = vadd.f32 0.0, %v384
    %v386 = vpop.f32.mrf.mxu0
    %387 = vdwg.mxu0
    %389 = vrot.lane.b32.xlu0 %v177, 64
    %v390 = vpop.permute.xlu0 %389
    %v393 = vsel %vm228, %v251, 0
    %395 = vmatprep.subr.bf16.mxu0 0
    %396 = vmatpush1.bf16.msra.mxu0 0
    %397 = vmatprep.subr.bf16.mxu0 0
    %398 = vmatpush1.bf16.msra.mxu0 0
    %399 = vmatprep.subr.bf16.mxu0 0
    %400 = vmatpush1.bf16.msra.mxu0 0
    %401 = vmatprep.subr.bf16.mxu0 0
    %402 = vmatpush1.bf16.msra.mxu0 0
    %403 = vmatprep.subr.bf16.mxu0 0
    %404 = vmatpush1.bf16.msra.mxu0 0
    %405 = vmatprep.subr.bf16.mxu0 0
    %406 = vmatpush1.bf16.msra.mxu0 0
    %407 = vmatprep.subr.bf16.mxu0 0
    %408 = vmatpush1.bf16.msra.mxu0 0
    %409 = vmatprep.subr.bf16.mxu0 0
    %410 = vmatpush1.bf16.msra.mxu0 %v390
    %411 = vmatprep.subr.bf16.mxu0 0
    %412 = vmatpush2.bf16.msra.mxu0 0
    %413 = vmatprep.subr.bf16.mxu0 0
    %414 = vmatpush2.bf16.msra.mxu0 0
    %415 = vmatprep.subr.bf16.mxu0 0
    %416 = vmatpush2.bf16.msra.mxu0 0
    %417 = vmatprep.subr.bf16.mxu0 0
    %418 = vmatpush2.bf16.msra.mxu0 0
    %419 = vmatprep.subr.bf16.mxu0 0
    %420 = vmatpush2.bf16.msra.mxu0 0
    %421 = vmatprep.subr.bf16.mxu0 0
    %422 = vmatpush2.bf16.msra.mxu0 0
    %423 = vmatprep.subr.bf16.mxu0 0
    %424 = vmatpush2.bf16.msra.mxu0 0
    %425 = vmatprep.subr.bf16.mxu0 0
    %426 = vmatpush2.bf16.msra.mxu0 0
    %427 = vmatprep.mubr.bf16.mxu0 0
    %428 = vmatmul.mubr.bf16.gmra.mxu0 %v393
    %v429 = vpop.f32.mrf.mxu0
    %v430 = vadd.f32 %v382, %v429
    %v431 = vpop.f32.mrf.mxu0
    %v432 = vpop.f32.mrf.mxu0
    %v433 = vadd.f32 %v385, %v432
    %v434 = vpop.f32.mrf.mxu0
    %435 = vdwg.mxu0
    %v436 = vpack.c.bf16 %v433, %v430
    %v437 = vld [vmem:[%s5] sm:$0xf]
    %v438 = vld [vmem:[%s5 + $0x4] sm:$0xf]
    %v439 = vld [vmem:[%s5 + $0x8] sm:$0xf]
    %v440 = vld [vmem:[%s5 + $0xc] sm:$0xf]
    %v441 = vlaneseq
    %v442 = vshrl.u32 %v441, 7
    %v443 = vsub.s32 6, %v442
    %v444 = vrot.slane %v50, %v443
    %v449 = vunpack.c.l.b16 %v437
    %v450 = vunpack.c.l.b16 %v438
    %v451 = vunpack.c.l.b16 %v439
    %v452 = vunpack.c.l.b16 %v440
    %v453 = vpack.c.b16 %v450, %v449
    %v454 = vpack.c.b16 %v452, %v451
    %v458 = vsel %vm52, %v436, 0
    %460 = vmatprep.subr.bf16.mxu0 0
    %461 = vmatpush1.bf16.msra.mxu0 0
    %462 = vmatprep.subr.bf16.mxu0 0
    %463 = vmatpush1.bf16.msra.mxu0 0
    %464 = vmatprep.subr.bf16.mxu0 0
    %465 = vmatpush1.bf16.msra.mxu0 0
    %466 = vmatprep.subr.bf16.mxu0 0
    %467 = vmatpush1.bf16.msra.mxu0 0
    %468 = vmatprep.subr.bf16.mxu0 0
    %469 = vmatpush1.bf16.msra.mxu0 0
    %470 = vmatprep.subr.bf16.mxu0 0
    %471 = vmatpush1.bf16.msra.mxu0 0
    %472 = vmatprep.subr.bf16.mxu0 0
    %473 = vmatpush1.bf16.msra.mxu0 %v454
    %474 = vmatprep.subr.bf16.mxu0 0
    %475 = vmatpush1.bf16.msra.mxu0 %v453
    %476 = vmatprep.subr.bf16.mxu0 0
    %477 = vmatpush2.bf16.msra.mxu0 0
    %478 = vmatprep.subr.bf16.mxu0 0
    %479 = vmatpush2.bf16.msra.mxu0 0
    %480 = vmatprep.subr.bf16.mxu0 0
    %481 = vmatpush2.bf16.msra.mxu0 0
    %482 = vmatprep.subr.bf16.mxu0 0
    %483 = vmatpush2.bf16.msra.mxu0 0
    %484 = vmatprep.subr.bf16.mxu0 0
    %485 = vmatpush2.bf16.msra.mxu0 0
    %486 = vmatprep.subr.bf16.mxu0 0
    %487 = vmatpush2.bf16.msra.mxu0 0
    %488 = vmatprep.subr.bf16.mxu0 0
    %489 = vmatpush2.bf16.msra.mxu0 0
    %490 = vmatprep.subr.bf16.mxu0 0
    %491 = vmatpush2.bf16.msra.mxu0 0
    %492 = vmatprep.mubr.bf16.mxu0 0
    %493 = vmatmul.mubr.bf16.gmra.mxu0 %v458
    %v494 = vpop.f32.mrf.mxu0
    %v495 = vadd.f32 %v444, %v494
    %v496 = vpop.f32.mrf.mxu0
    %v497 = vpop.f32.mrf.mxu0
    %v498 = vadd.f32 %v444, %v497
    %v499 = vpop.f32.mrf.mxu0
    %500 = vdwg.mxu0
    %v501 = vadd.f32 %v45, %v495
    %v502 = vadd.f32 %v46, %v498
    %v503 = vsel %vm52, %v501, 0.0
    %504 = vadd.xlane.f32.xlu0 %v503
    %v505 = vpop.xlane.xlu0 %504
    %v506 = vsel %vm52, %v502, 0.0
    %507 = vadd.xlane.f32.xlu0 %v506
    %v508 = vpop.xlane.xlu0 %507
    %v509 = vmul.f32 %v505, %v59
    %v510 = vmul.f32 %v508, %v59
    %v511 = vsub.f32 %v501, %v509
    %v512 = vsub.f32 %v502, %v510
    %v513 = vmul.f32 %v511, %v511
    %v514 = vmul.f32 %v512, %v512
    %v515 = vsel %vm52, %v513, 0.0
    %516 = vadd.xlane.f32.xlu0 %v515
    %v517 = vpop.xlane.xlu0 %516
    %v518 = vsel %vm52, %v514, 0.0
    %519 = vadd.xlane.f32.xlu0 %v518
    %v520 = vpop.xlane.xlu0 %519
    %v521 = vmul.f32 %v517, %v59
    %v522 = vmul.f32 %v520, %v59
    %v523 = vadd.f32 %v521, 1e-05
    %v524 = vadd.f32 %v522, 1e-05
    %v525 = vrsqrt.pop %v523
    %v526 = vrsqrt.pop %v524
    %v527 = vmul.f32 %v511, %v525
    %v528 = vmul.f32 %v512, %v526
    %v529 = vlaneseq
    %v530 = vshrl.u32 %v529, 7
    %v531 = vsub.s32 2, %v530
    %v532 = vrot.slane %v50, %v531
    %v533 = vmul.f32 %v527, %v532
    %v534 = vmul.f32 %v528, %v532
    %v535 = vlaneseq
    %v536 = vshrl.u32 %v535, 7
    %v537 = vsub.s32 3, %v536
    %v538 = vrot.slane %v50, %v537
    %v539 = vadd.f32 %v533, %v538
    %v540 = vadd.f32 %v534, %v538
    %v541 = vpack.c.bf16 %v540, %v539
    %v542 = vld [vmem:[#allocation2] sm:$0xf]
    %v543 = vld [vmem:[#allocation2 + $0x4] sm:$0xf]
    %v544 = vld [vmem:[#allocation2 + $0x8] sm:$0xf]
    %v545 = vld [vmem:[#allocation2 + $0xc] sm:$0xf]
    %v546 = vlaneseq
    %v547 = vshrl.u32 %v546, 7
    %v548 = vsub.s32 1, %v547
    %v549 = vrot.slane %v51, %v548
    %v554 = vunpack.c.l.b16 %v542
    %v555 = vunpack.c.l.b16 %v543
    %v556 = vunpack.c.l.b16 %v544
    %v557 = vunpack.c.l.b16 %v545
    %v558 = vpack.c.b16 %v555, %v554
    %v559 = vpack.c.b16 %v557, %v556
    %v563 = vsel %vm52, %v541, 0
    %565 = vmatprep.subr.bf16.mxu0 0
    %566 = vmatpush1.bf16.msra.mxu0 0
    %567 = vmatprep.subr.bf16.mxu0 0
    %568 = vmatpush1.bf16.msra.mxu0 0
    %569 = vmatprep.subr.bf16.mxu0 0
    %570 = vmatpush1.bf16.msra.mxu0 0
    %571 = vmatprep.subr.bf16.mxu0 0
    %572 = vmatpush1.bf16.msra.mxu0 0
    %573 = vmatprep.subr.bf16.mxu0 0
    %574 = vmatpush1.bf16.msra.mxu0 0
    %575 = vmatprep.subr.bf16.mxu0 0
    %576 = vmatpush1.bf16.msra.mxu0 0
    %577 = vmatprep.subr.bf16.mxu0 0
    %578 = vmatpush1.bf16.msra.mxu0 %v559
    %579 = vmatprep.subr.bf16.mxu0 0
    %580 = vmatpush1.bf16.msra.mxu0 %v558
    %581 = vmatprep.subr.bf16.mxu0 0
    %582 = vmatpush2.bf16.msra.mxu0 0
    %583 = vmatprep.subr.bf16.mxu0 0
    %584 = vmatpush2.bf16.msra.mxu0 0
    %585 = vmatprep.subr.bf16.mxu0 0
    %586 = vmatpush2.bf16.msra.mxu0 0
    %587 = vmatprep.subr.bf16.mxu0 0
    %588 = vmatpush2.bf16.msra.mxu0 0
    %589 = vmatprep.subr.bf16.mxu0 0
    %590 = vmatpush2.bf16.msra.mxu0 0
    %591 = vmatprep.subr.bf16.mxu0 0
    %592 = vmatpush2.bf16.msra.mxu0 0
    %593 = vmatprep.subr.bf16.mxu0 0
    %594 = vmatpush2.bf16.msra.mxu0 0
    %595 = vmatprep.subr.bf16.mxu0 0
    %596 = vmatpush2.bf16.msra.mxu0 0
    %597 = vmatprep.mubr.bf16.mxu0 0
    %598 = vmatmul.mubr.bf16.gmra.mxu0 %v563
    %v599 = vpop.f32.mrf.mxu0
    %v600 = vadd.f32 %v549, %v599
    %v601 = vpop.f32.mrf.mxu0
    %v602 = vpop.f32.mrf.mxu0
    %v603 = vadd.f32 %v549, %v602
    %v604 = vpop.f32.mrf.mxu0
    %605 = vdwg.mxu0
    %v606 = vmul.f32 %v600, %v600
    %v607 = vmul.f32 %v603, %v603
    %v608 = vmul.f32 %v600, %v606
    %v609 = vmul.f32 %v603, %v607
    %v610 = vmul.f32 %v608, 0.044715
    %v611 = vmul.f32 %v609, 0.044715
    %v612 = vadd.f32 %v600, %v610
    %v613 = vadd.f32 %v603, %v611
    %v614 = vmul.f32 %v612, 0.7978846
    %v615 = vmul.f32 %v613, 0.7978846
    %v616 = vtanh.pop %v614
    %v617 = vtanh.pop %v615
    %v618 = vadd.f32 %v616, 1.0
    %v619 = vadd.f32 %v617, 1.0
    %v620 = vmul.f32 %v618, 0.5
    %v621 = vmul.f32 %v619, 0.5
    %v622 = vmul.f32 %v600, %v620
    %v623 = vmul.f32 %v603, %v621
    %v624 = vpack.c.bf16 %v623, %v622
    %v625 = vld [vmem:[%s7] sm:$0xf]
    %v626 = vld [vmem:[%s7 + $0x4] sm:$0xf]
    %v627 = vld [vmem:[%s7 + $0x8] sm:$0xf]
    %v628 = vld [vmem:[%s7 + $0xc] sm:$0xf]
    %v629 = vld [vmem:[%s7 + $0x10] sm:$0xf]
    %v630 = vld [vmem:[%s7 + $0x14] sm:$0xf]
    %v631 = vld [vmem:[%s7 + $0x18] sm:$0xf]
    %v632 = vld [vmem:[%s7 + $0x1c] sm:$0xf]
    %v633 = vld [vmem:[%s7 + $0x20] sm:$0xf]
    %v634 = vld [vmem:[%s7 + $0x24] sm:$0xf]
    %v635 = vld [vmem:[%s7 + $0x28] sm:$0xf]
    %v636 = vld [vmem:[%s7 + $0x2c] sm:$0xf]
    %v637 = vld [vmem:[%s7 + $0x30] sm:$0xf]
    %v638 = vld [vmem:[%s7 + $0x34] sm:$0xf]
    %v639 = vld [vmem:[%s7 + $0x38] sm:$0xf]
    %v640 = vld [vmem:[%s7 + $0x3c] sm:$0xf]
    %v641 = vlaneseq
    %v642 = vshrl.u32 %v641, 7
    %v643 = vsub.s32 7, %v642
    %v644 = vrot.slane %v50, %v643
    %v661 = vunpack.c.l.b16 %v625
    %v662 = vunpack.c.l.b16 %v626
    %v663 = vunpack.c.l.b16 %v627
    %v664 = vunpack.c.l.b16 %v628
    %v665 = vunpack.c.l.b16 %v629
    %v666 = vunpack.c.l.b16 %v630
    %v667 = vunpack.c.l.b16 %v631
    %v668 = vunpack.c.l.b16 %v632
    %v669 = vunpack.c.l.b16 %v633
    %v670 = vunpack.c.l.b16 %v634
    %v671 = vunpack.c.l.b16 %v635
    %v672 = vunpack.c.l.b16 %v636
    %v673 = vunpack.c.l.b16 %v637
    %v674 = vunpack.c.l.b16 %v638
    %v675 = vunpack.c.l.b16 %v639
    %v676 = vunpack.c.l.b16 %v640
    %v677 = vpack.c.b16 %v662, %v661
    %v678 = vpack.c.b16 %v664, %v663
    %v679 = vpack.c.b16 %v666, %v665
    %v680 = vpack.c.b16 %v668, %v667
    %v681 = vpack.c.b16 %v670, %v669
    %v682 = vpack.c.b16 %v672, %v671
    %v683 = vpack.c.b16 %v674, %v673
    %v684 = vpack.c.b16 %v676, %v675
    %693 = vmatprep.subr.bf16.mxu0 0
    %694 = vmatpush1.bf16.msra.mxu0 %v684
    %695 = vmatprep.subr.bf16.mxu0 0
    %696 = vmatpush1.bf16.msra.mxu0 %v683
    %697 = vmatprep.subr.bf16.mxu0 0
    %698 = vmatpush1.bf16.msra.mxu0 %v682
    %699 = vmatprep.subr.bf16.mxu0 0
    %700 = vmatpush1.bf16.msra.mxu0 %v681
    %701 = vmatprep.subr.bf16.mxu0 0
    %702 = vmatpush1.bf16.msra.mxu0 %v680
    %703 = vmatprep.subr.bf16.mxu0 0
    %704 = vmatpush1.bf16.msra.mxu0 %v679
    %705 = vmatprep.subr.bf16.mxu0 0
    %706 = vmatpush1.bf16.msra.mxu0 %v678
    %707 = vmatprep.subr.bf16.mxu0 0
    %708 = vmatpush1.bf16.msra.mxu0 %v677
    %709 = vmatprep.subr.bf16.mxu0 0
    %710 = vmatpush2.bf16.msra.mxu0 0
    %711 = vmatprep.subr.bf16.mxu0 0
    %712 = vmatpush2.bf16.msra.mxu0 0
    %713 = vmatprep.subr.bf16.mxu0 0
    %714 = vmatpush2.bf16.msra.mxu0 0
    %715 = vmatprep.subr.bf16.mxu0 0
    %716 = vmatpush2.bf16.msra.mxu0 0
    %717 = vmatprep.subr.bf16.mxu0 0
    %718 = vmatpush2.bf16.msra.mxu0 0
    %719 = vmatprep.subr.bf16.mxu0 0
    %720 = vmatpush2.bf16.msra.mxu0 0
    %721 = vmatprep.subr.bf16.mxu0 0
    %722 = vmatpush2.bf16.msra.mxu0 0
    %723 = vmatprep.subr.bf16.mxu0 0
    %724 = vmatpush2.bf16.msra.mxu0 0
    %725 = vmatprep.mubr.bf16.mxu0 0
    %726 = vmatmul.mubr.bf16.gmra.mxu0 %v624
    %v727 = vpop.f32.mrf.mxu0
    %v728 = vadd.f32 %v644, %v727
    %v729 = vpop.f32.mrf.mxu0
    %v730 = vpop.f32.mrf.mxu0
    %v731 = vadd.f32 %v644, %v730
    %v732 = vpop.f32.mrf.mxu0
    %733 = vdwg.mxu0
    %v734 = vadd.f32 %v501, %v728
    %v735 = vadd.f32 %v502, %v731
    %v736 = vsel %vm52, %v734, 0.0
    %737 = vadd.xlane.f32.xlu0 %v736
    %v738 = vpop.xlane.xlu0 %737
    %v739 = vsel %vm52, %v735, 0.0
    %740 = vadd.xlane.f32.xlu0 %v739
    %v741 = vpop.xlane.xlu0 %740
    %v742 = vmul.f32 %v738, %v59
    %v743 = vmul.f32 %v741, %v59
    %v744 = vsub.f32 %v734, %v742
    %v745 = vsub.f32 %v735, %v743
    %v746 = vmul.f32 %v744, %v744
    %v747 = vmul.f32 %v745, %v745
    %v748 = vsel %vm52, %v746, 0.0
    %749 = vadd.xlane.f32.xlu0 %v748
    %v750 = vpop.xlane.xlu0 %749
    %v751 = vsel %vm52, %v747, 0.0
    %752 = vadd.xlane.f32.xlu0 %v751
    %v753 = vpop.xlane.xlu0 %752
    %v754 = vmul.f32 %v750, %v59
    %v755 = vmul.f32 %v753, %v59
    %v756 = vadd.f32 %v754, 1e-05
    %v757 = vadd.f32 %v755, 1e-05
    %v758 = vrsqrt.pop %v756
    %v759 = vrsqrt.pop %v757
    %v760 = vmul.f32 %v744, %v758
    %v761 = vmul.f32 %v745, %v759
    %v762 = vlaneseq
    %v763 = vshrl.u32 %v762, 7
    %v764 = vsub.s32 4, %v763
    %v765 = vrot.slane %v50, %v764
    %v766 = vmul.f32 %v760, %v765
    %v767 = vmul.f32 %v761, %v765
    %v768 = vlaneseq
    %v769 = vshrl.u32 %v768, 7
    %v770 = vsub.s32 5, %v769
    %v771 = vrot.slane %v50, %v770
    %v772 = vadd.f32 %v766, %v771
    %v773 = vadd.f32 %v767, %v771
    %v775 = vsel %vm228, %v49, 0
    %777 = vmatprep.subr.mxu0 0.0
    %778 = vmatpush1.msra.mxu0 0.0
    %779 = vmatprep.subr.mxu0 0.0
    %780 = vmatpush1.msra.mxu0 0.0
    %781 = vmatprep.subr.mxu0 0.0
    %782 = vmatpush1.msra.mxu0 0.0
    %783 = vmatprep.subr.mxu0 0.0
    %784 = vmatpush1.msra.mxu0 0.0
    %785 = vmatprep.subr.mxu0 0.0
    %786 = vmatpush1.msra.mxu0 0.0
    %787 = vmatprep.subr.mxu0 0.0
    %788 = vmatpush1.msra.mxu0 0.0
    %789 = vmatprep.subr.mxu0 0.0
    %790 = vmatpush1.msra.mxu0 0.0
    %791 = vmatprep.subr.mxu0 0.0
    %792 = vmatpush1.msra.mxu0 0.0
    %793 = vmatprep.subr.mxu0 0.0
    %794 = vmatpush1.msra.mxu0 0.0
    %795 = vmatprep.subr.mxu0 0.0
    %796 = vmatpush1.msra.mxu0 0.0
    %797 = vmatprep.subr.mxu0 0.0
    %798 = vmatpush1.msra.mxu0 0.0
    %799 = vmatprep.subr.mxu0 0.0
    %800 = vmatpush1.msra.mxu0 0.0
    %801 = vmatprep.subr.mxu0 0.0
    %802 = vmatpush1.msra.mxu0 0.0
    %803 = vmatprep.subr.mxu0 0.0
    %804 = vmatpush1.msra.mxu0 0.0
    %805 = vmatprep.subr.mxu0 0.0
    %806 = vmatpush1.msra.mxu0 %v773
    %807 = vmatprep.subr.mxu0 0.0
    %808 = vmatpush1.msra.mxu0 %v772
    %809 = vmatprep.subr.mxu0 0.0
    %810 = vmatpush2.msra.mxu0 0.0
    %811 = vmatprep.subr.mxu0 0.0
    %812 = vmatpush2.msra.mxu0 0.0
    %813 = vmatprep.subr.mxu0 0.0
    %814 = vmatpush2.msra.mxu0 0.0
    %815 = vmatprep.subr.mxu0 0.0
    %816 = vmatpush2.msra.mxu0 0.0
    %817 = vmatprep.subr.mxu0 0.0
    %818 = vmatpush2.msra.mxu0 0.0
    %819 = vmatprep.subr.mxu0 0.0
    %820 = vmatpush2.msra.mxu0 0.0
    %821 = vmatprep.subr.mxu0 0.0
    %822 = vmatpush2.msra.mxu0 0.0
    %823 = vmatprep.subr.mxu0 0.0
    %824 = vmatpush2.msra.mxu0 0.0
    %825 = vmatprep.subr.mxu0 0.0
    %826 = vmatpush2.msra.mxu0 0.0
    %827 = vmatprep.subr.mxu0 0.0
    %828 = vmatpush2.msra.mxu0 0.0
    %829 = vmatprep.subr.mxu0 0.0
    %830 = vmatpush2.msra.mxu0 0.0
    %831 = vmatprep.subr.mxu0 0.0
    %832 = vmatpush2.msra.mxu0 0.0
    %833 = vmatprep.subr.mxu0 0.0
    %834 = vmatpush2.msra.mxu0 0.0
    %835 = vmatprep.subr.mxu0 0.0
    %836 = vmatpush2.msra.mxu0 0.0
    %837 = vmatprep.subr.mxu0 0.0
    %838 = vmatpush2.msra.mxu0 0.0
    %839 = vmatprep.subr.mxu0 0.0
    %840 = vmatpush2.msra.mxu0 0.0
    %841 = vmatprep.mubr.f32.mxu0 0.0
    %842 = vmatmul.mubr.f32.gmra.mxu0 %v775
    %v843 = vpop.f32.mrf.mxu0
    %v844 = vadd.f32 0.0, %v843
    %v845 = vpop.f32.mrf.mxu0
    %846 = vdwg.mxu0
    %vm847 = vcmask 123904
    %v848 = vsel %vm847, %v49, 0.0
    %849 = vadd.xlane.f32.xlu0 %v848
    %v850 = vpop.xlane.xlu0 %849
    %v851 = vmax.f32 %v850, 1e-09
    %v852 = vrcp.pop %v851
    %v853 = vmul.f32 %v844, %v852
    %vm854 = vcmask 254976
    %855 = vst.msk [vmem:[#allocation5] sm:$0x3] %vm854, %v853
    // Predicated region
    $region38: #{tpu_custom_call.1} parent=1 // pred_check
      _
    $region39: #{tpu_custom_call.1} parent=1 // pred_check_branch
      %857 = sbr.rel (0) target = $region41
    $region40: #{tpu_custom_call.1} parent=1 // pred_region
      %s859 = ssub.s32 32, 32
      %860 = vsyncadd [#allocation4], %s859
      %s862 = sshll.u32 [#allocation5], 4
      %s863 = int_to_ptr.vmem [resolvable:$true] %s862
      %865 = dma.vmem_to_hbm [thread:$0]  %s863, 32, %s8, [#allocation4]
    $region41: #{tpu_custom_call.1} parent=1 // pred_fallthru
      _
    // Predicated region
    $region42: #{tpu_custom_call.1} parent=1 // pred_check
      _
    $region43: #{tpu_custom_call.1} parent=1 // pred_check_branch
      %867 = sbr.rel (0) target = $region45
    $region44: #{tpu_custom_call.1} parent=1 // pred_region
      %868 = dma.done [#allocation4], 32
    $region45: #{tpu_custom_call.1} parent=1 // pred_fallthru
      _
    %869 = vsyncpa [#allocation3], 1
    %870 = vsyncpa [#allocation4], 1

</llo_original>
